<compile_context>
chip_gen: v6e
topology: v6e:2x2x1
jax: 0.10.0
libtpu: 0.0.40
codegen_flags: <defaults>
</compile_context>

<pallas_src>
import jax
import jax.numpy as jnp
from jax import lax
from jax.experimental import pallas as pl
from jax.experimental.pallas import tpu as pltpu


def make_kernel(num_layers, num_filters, B, L):
    C = num_filters

    def kernel(x_ref, *refs):
        # refs = [mw_0, bcol_0, ..., mw_{nl-1}, bcol_{nl-1}, wl, ssel, mask_l, mask_r, bl, out]
        conv_refs = refs[: 2 * num_layers]
        wl_ref = refs[2 * num_layers]           # (C*B, L)  VMEM   linear weight tile
        ssel_ref = refs[2 * num_layers + 1]     # (B, C*B)  VMEM   batch selector
        ml_ref = refs[2 * num_layers + 2]       # (1, L)    VMEM   zero at l == 0
        mr_ref = refs[2 * num_layers + 3]       # (1, L)    VMEM   zero at l == L-1
        bl_ref = refs[2 * num_layers + 4]       # (1,)      SMEM   linear bias
        out_ref = refs[2 * num_layers + 5]      # (B, 1)    VMEM

        mask_l = ml_ref[...]
        mask_r = mr_ref[...]

        # Stacked activations: rows are (channel, batch) = c*B + b.  Layer 0 has cin=1 -> (B, L).
        h = x_ref[...]
        for layer in range(num_layers):
            mw_ref = conv_refs[2 * layer]        # (3, C*B, cin*B) tap matrices (block-diag in b)
            bcol_ref = conv_refs[2 * layer + 1]  # (C*B, 1)

            # Neighbour taps via XLU rolls + edge masks (zero "same" padding); no MXU shifts.
            h_m1 = pltpu.roll(h, shift=1, axis=1) * mask_l       # x[l-1], zero at l = 0
            h_p1 = pltpu.roll(h, shift=L - 1, axis=1) * mask_r   # x[l+1], zero at l = L-1

            # Channel mixing: one tiny MXU matmul per tap on the whole stacked tile.
            pre = jnp.dot(mw_ref[0], h_m1, preferred_element_type=jnp.float32)
            pre = pre + jnp.dot(mw_ref[1], h, preferred_element_type=jnp.float32)
            pre = pre + jnp.dot(mw_ref[2], h_p1, preferred_element_type=jnp.float32)
            h = jnp.maximum(pre + bcol_ref[...], 0.0)            # bias + ReLU, one vreg tile

        # Final Linear on the flattened (C, L) features (torch flatten order is channel-major).
        prod = h * wl_ref[...]                                   # (C*B, L)
        bsum = jnp.dot(ssel_ref[...], prod,
                       preferred_element_type=jnp.float32)       # (B, L): per-b sum over channels
        out_ref[...] = jnp.sum(bsum, axis=1, keepdims=True) + bl_ref[0]

    return kernel


def dna_barcode_cnn_1d_forward(x, conv_ws, conv_bs, lin_w, lin_b, num_filters):
    B, L = x.shape
    num_layers = len(conv_ws)
    C = num_filters
    f32 = jnp.float32
    kernel = make_kernel(num_layers, C, B, L)

    vmem = pl.BlockSpec(memory_space=pltpu.MemorySpace.VMEM)
    smem = pl.BlockSpec(memory_space=pltpu.MemorySpace.SMEM)
    eye_b = jnp.eye(B, dtype=f32)

    args = [x.astype(f32)]
    in_specs = [vmem]
    for w, b in zip(conv_ws, conv_bs):
        cin = w.shape[1]
        # Block-diagonal-in-batch tap matrices: mw[k, co*B + b, ci*B + b'] = w[co, ci, k]*(b==b')
        mw = jnp.einsum("oik,bd->kobid", w.astype(f32), eye_b).reshape(3, C * B, cin * B)
        args.append(mw)
        in_specs.append(vmem)
        args.append(jnp.repeat(b.astype(f32), B).reshape(C * B, 1))   # bias column (C*B, 1)
        in_specs.append(vmem)

    # torch Linear weight (1, C*L) -> (C*B, L) tile matching the stacked-row layout c*B + b.
    wl = jnp.repeat(lin_w.astype(f32).reshape(C, 1, L), B, axis=1).reshape(C * B, L)
    args.append(wl)
    in_specs.append(vmem)
    args.append(jnp.tile(eye_b, (1, C)))                              # (B, C*B) batch selector
    in_specs.append(vmem)
    lane = jnp.arange(L)
    args.append((lane >= 1).astype(f32).reshape(1, L))                # edge mask for x[l-1]
    in_specs.append(vmem)
    args.append((lane <= L - 2).astype(f32).reshape(1, L))            # edge mask for x[l+1]
    in_specs.append(vmem)
    args.append(lin_b.astype(f32))                                    # (1,) scalar -> SMEM
    in_specs.append(smem)

    return pl.pallas_call(
        kernel,
        out_shape=jax.ShapeDtypeStruct((B, 1), f32),
        in_specs=in_specs,
        out_specs=vmem,
    )(*args)


def reference_forward(x, conv_ws, conv_bs, lin_w, lin_b):
    """Pure-JAX reference mirroring the torch forward (NCW conv layout)."""
    B, L = x.shape
    h = x.reshape(B, 1, L)
    for w, b in zip(conv_ws, conv_bs):
        h = lax.conv_general_dilated(
            h, w, window_strides=(1,), padding=[(1, 1)],
            dimension_numbers=("NCH", "OIH", "NCH"))
        h = jnp.maximum(h + b.reshape(1, -1, 1), 0.0)
    flat = h.reshape(B, -1)
    return flat @ lin_w.T + lin_b


if __name__ == "__main__":
    B, L = 2, 16
    num_layers, num_filters = 2, 4
    C = num_filters
    # Equivalent torch construction:
    #   dna_barcode_CNN_1d(input_size=C*L + 2*num_layers, num_layers=2, num_filters=4)

    key = jax.random.PRNGKey(0)
    keys = jax.random.split(key, 2 * num_layers + 3)

    conv_ws, conv_bs = [], []
    for i in range(num_layers):
        cin = 1 if i == 0 else C
        conv_ws.append(jax.random.normal(keys[2 * i], (C, cin, 3), jnp.float32) * 0.3)
        conv_bs.append(jax.random.normal(keys[2 * i + 1], (C,), jnp.float32) * 0.1)
    lin_w = jax.random.normal(keys[-3], (1, C * L), jnp.float32) * 0.1
    lin_b = jax.random.normal(keys[-2], (1,), jnp.float32) * 0.1
    x = jax.random.normal(keys[-1], (B, L), jnp.float32)

    out = dna_barcode_cnn_1d_forward(x, conv_ws, conv_bs, lin_w, lin_b, num_filters)
    out = jax.block_until_ready(out)

    ref = reference_forward(x, conv_ws, conv_bs, lin_w, lin_b)
    assert out.shape == (B, 1)
    assert jnp.allclose(out, ref, atol=1e-3, rtol=1e-3), (out, ref)
    print("KERNEL_OK")
</pallas_src>

<mosaic_0001>
module attributes {stable_mosaic.version = 11 : i64} {
  func.func @kernel(%arg0: memref<2x16xf32, #tpu.memory_space<vmem>>, %arg1: memref<3x8x2xf32, #tpu.memory_space<vmem>>, %arg2: memref<8x1xf32, #tpu.memory_space<vmem>>, %arg3: memref<3x8x8xf32, #tpu.memory_space<vmem>>, %arg4: memref<8x1xf32, #tpu.memory_space<vmem>>, %arg5: memref<8x16xf32, #tpu.memory_space<vmem>>, %arg6: memref<2x8xf32, #tpu.memory_space<vmem>>, %arg7: memref<1x16xf32, #tpu.memory_space<vmem>>, %arg8: memref<1x16xf32, #tpu.memory_space<vmem>>, %arg9: memref<1xf32, #tpu.memory_space<smem>>, %arg10: memref<2x1xf32, #tpu.memory_space<vmem>>) attributes {dimension_semantics = [], scalar_prefetch = 0 : i64, scratch_operands = 0 : i64, tpu.core_type = #tpu.core_type<tc>} {
    %c0 = arith.constant 0 : index
    %c0_0 = arith.constant 0 : index
    %0 = vector.load %arg7[%c0, %c0_0] : memref<1x16xf32, #tpu.memory_space<vmem>>, vector<1x16xf32>
    %c0_1 = arith.constant 0 : index
    %c0_2 = arith.constant 0 : index
    %1 = vector.load %arg8[%c0_1, %c0_2] : memref<1x16xf32, #tpu.memory_space<vmem>>, vector<1x16xf32>
    %c0_3 = arith.constant 0 : index
    %c0_4 = arith.constant 0 : index
    %2 = vector.load %arg0[%c0_3, %c0_4] : memref<2x16xf32, #tpu.memory_space<vmem>>, vector<2x16xf32>
    %c1_i32 = arith.constant 1 : i32
    %3 = tpu.dynamic_rotate %2 by %c1_i32 dim 1 : vector<2x16xf32>, i32 -> vector<2x16xf32>
    %4 = vector.broadcast %0 : vector<1x16xf32> to vector<2x16xf32>
    %5 = arith.mulf %3, %4 : vector<2x16xf32>
    %c15_i32 = arith.constant 15 : i32
    %6 = tpu.dynamic_rotate %2 by %c15_i32 dim 1 : vector<2x16xf32>, i32 -> vector<2x16xf32>
    %7 = vector.broadcast %1 : vector<1x16xf32> to vector<2x16xf32>
    %8 = arith.mulf %6, %7 : vector<2x16xf32>
    %c0_5 = arith.constant 0 : index
    %c0_6 = arith.constant 0 : index
    %c0_7 = arith.constant 0 : index
    %9 = vector.load %arg1[%c0_5, %c0_6, %c0_7] : memref<3x8x2xf32, #tpu.memory_space<vmem>>, vector<1x8x2xf32>
    %10 = vector.shape_cast %9 : vector<1x8x2xf32> to vector<8x2xf32>
    %cst = arith.constant dense<0.000000e+00> : vector<8x16xf32>
    %11 = tpu.matmul %10, %5, %cst {dimension_numbers = #tpu.dot_dimension_numbers<[1], [0], [0], [1], [0, 0, 1, 1], [], []>} : vector<8x2xf32>, vector<2x16xf32>, vector<8x16xf32> -> vector<8x16xf32>
    %c1 = arith.constant 1 : index
    %c0_8 = arith.constant 0 : index
    %c0_9 = arith.constant 0 : index
    %12 = vector.load %arg1[%c1, %c0_8, %c0_9] : memref<3x8x2xf32, #tpu.memory_space<vmem>>, vector<1x8x2xf32>
    %13 = vector.shape_cast %12 : vector<1x8x2xf32> to vector<8x2xf32>
    %cst_10 = arith.constant dense<0.000000e+00> : vector<8x16xf32>
    %14 = tpu.matmul %13, %2, %cst_10 {dimension_numbers = #tpu.dot_dimension_numbers<[1], [0], [0], [1], [0, 0, 1, 1], [], []>} : vector<8x2xf32>, vector<2x16xf32>, vector<8x16xf32> -> vector<8x16xf32>
    %15 = arith.addf %11, %14 : vector<8x16xf32>
    %c2 = arith.constant 2 : index
    %c0_11 = arith.constant 0 : index
    %c0_12 = arith.constant 0 : index
    %16 = vector.load %arg1[%c2, %c0_11, %c0_12] : memref<3x8x2xf32, #tpu.memory_space<vmem>>, vector<1x8x2xf32>
    %17 = vector.shape_cast %16 : vector<1x8x2xf32> to vector<8x2xf32>
    %cst_13 = arith.constant dense<0.000000e+00> : vector<8x16xf32>
    %18 = tpu.matmul %17, %8, %cst_13 {dimension_numbers = #tpu.dot_dimension_numbers<[1], [0], [0], [1], [0, 0, 1, 1], [], []>} : vector<8x2xf32>, vector<2x16xf32>, vector<8x16xf32> -> vector<8x16xf32>
    %19 = arith.addf %15, %18 : vector<8x16xf32>
    %c0_14 = arith.constant 0 : index
    %c0_15 = arith.constant 0 : index
    %20 = vector.load %arg2[%c0_14, %c0_15] : memref<8x1xf32, #tpu.memory_space<vmem>>, vector<8x1xf32>
    %21 = vector.broadcast %20 : vector<8x1xf32> to vector<8x16xf32>
    %22 = arith.addf %19, %21 : vector<8x16xf32>
    %cst_16 = arith.constant 0.000000e+00 : f32
    %23 = vector.broadcast %cst_16 : f32 to vector<8x16xf32>
    %24 = arith.maximumf %22, %23 : vector<8x16xf32>
    %c1_i32_17 = arith.constant 1 : i32
    %25 = tpu.dynamic_rotate %24 by %c1_i32_17 dim 1 : vector<8x16xf32>, i32 -> vector<8x16xf32>
    %26 = vector.broadcast %0 : vector<1x16xf32> to vector<8x16xf32>
    %27 = arith.mulf %25, %26 : vector<8x16xf32>
    %c15_i32_18 = arith.constant 15 : i32
    %28 = tpu.dynamic_rotate %24 by %c15_i32_18 dim 1 : vector<8x16xf32>, i32 -> vector<8x16xf32>
    %29 = vector.broadcast %1 : vector<1x16xf32> to vector<8x16xf32>
    %30 = arith.mulf %28, %29 : vector<8x16xf32>
    %c0_19 = arith.constant 0 : index
    %c0_20 = arith.constant 0 : index
    %c0_21 = arith.constant 0 : index
    %31 = vector.load %arg3[%c0_19, %c0_20, %c0_21] : memref<3x8x8xf32, #tpu.memory_space<vmem>>, vector<1x8x8xf32>
    %32 = vector.shape_cast %31 : vector<1x8x8xf32> to vector<8x8xf32>
    %cst_22 = arith.constant dense<0.000000e+00> : vector<8x16xf32>
    %33 = tpu.matmul %32, %27, %cst_22 {dimension_numbers = #tpu.dot_dimension_numbers<[1], [0], [0], [1], [0, 0, 1, 1], [], []>} : vector<8x8xf32>, vector<8x16xf32>, vector<8x16xf32> -> vector<8x16xf32>
    %c1_23 = arith.constant 1 : index
    %c0_24 = arith.constant 0 : index
    %c0_25 = arith.constant 0 : index
    %34 = vector.load %arg3[%c1_23, %c0_24, %c0_25] : memref<3x8x8xf32, #tpu.memory_space<vmem>>, vector<1x8x8xf32>
    %35 = vector.shape_cast %34 : vector<1x8x8xf32> to vector<8x8xf32>
    %cst_26 = arith.constant dense<0.000000e+00> : vector<8x16xf32>
    %36 = tpu.matmul %35, %24, %cst_26 {dimension_numbers = #tpu.dot_dimension_numbers<[1], [0], [0], [1], [0, 0, 1, 1], [], []>} : vector<8x8xf32>, vector<8x16xf32>, vector<8x16xf32> -> vector<8x16xf32>
    %37 = arith.addf %33, %36 : vector<8x16xf32>
    %c2_27 = arith.constant 2 : index
    %c0_28 = arith.constant 0 : index
    %c0_29 = arith.constant 0 : index
    %38 = vector.load %arg3[%c2_27, %c0_28, %c0_29] : memref<3x8x8xf32, #tpu.memory_space<vmem>>, vector<1x8x8xf32>
    %39 = vector.shape_cast %38 : vector<1x8x8xf32> to vector<8x8xf32>
    %cst_30 = arith.constant dense<0.000000e+00> : vector<8x16xf32>
    %40 = tpu.matmul %39, %30, %cst_30 {dimension_numbers = #tpu.dot_dimension_numbers<[1], [0], [0], [1], [0, 0, 1, 1], [], []>} : vector<8x8xf32>, vector<8x16xf32>, vector<8x16xf32> -> vector<8x16xf32>
    %41 = arith.addf %37, %40 : vector<8x16xf32>
    %c0_31 = arith.constant 0 : index
    %c0_32 = arith.constant 0 : index
    %42 = vector.load %arg4[%c0_31, %c0_32] : memref<8x1xf32, #tpu.memory_space<vmem>>, vector<8x1xf32>
    %43 = vector.broadcast %42 : vector<8x1xf32> to vector<8x16xf32>
    %44 = arith.addf %41, %43 : vector<8x16xf32>
    %cst_33 = arith.constant 0.000000e+00 : f32
    %45 = vector.broadcast %cst_33 : f32 to vector<8x16xf32>
    %46 = arith.maximumf %44, %45 : vector<8x16xf32>
    %c0_34 = arith.constant 0 : index
    %c0_35 = arith.constant 0 : index
    %47 = vector.load %arg5[%c0_34, %c0_35] : memref<8x16xf32, #tpu.memory_space<vmem>>, vector<8x16xf32>
    %48 = arith.mulf %46, %47 : vector<8x16xf32>
    %c0_36 = arith.constant 0 : index
    %c0_37 = arith.constant 0 : index
    %49 = vector.load %arg6[%c0_36, %c0_37] : memref<2x8xf32, #tpu.memory_space<vmem>>, vector<2x8xf32>
    %cst_38 = arith.constant dense<0.000000e+00> : vector<2x16xf32>
    %50 = tpu.matmul %49, %48, %cst_38 {dimension_numbers = #tpu.dot_dimension_numbers<[1], [0], [0], [1], [0, 0, 1, 1], [], []>} : vector<2x8xf32>, vector<8x16xf32>, vector<2x16xf32> -> vector<2x16xf32>
    %cst_39 = arith.constant dense<0.000000e+00> : vector<2xf32>
    %51 = vector.multi_reduction <add>, %50, %cst_39 [1] : vector<2x16xf32> to vector<2xf32>
    %52 = vector.shape_cast %51 : vector<2xf32> to vector<2x1xf32>
    %c0_40 = arith.constant 0 : index
    %53 = memref.load %arg9[%c0_40] : memref<1xf32, #tpu.memory_space<smem>>
    %54 = vector.broadcast %53 : f32 to vector<2x1xf32>
    %55 = arith.addf %52, %54 : vector<2x1xf32>
    %c0_41 = arith.constant 0 : index
    %c0_42 = arith.constant 0 : index
    %56 = vector.load %arg10[%c0_41, %c0_42] : memref<2x1xf32, #tpu.memory_space<vmem>>, vector<2x1xf32>
    tpu.vector_store %arg10[%c0_41, %c0_42], %55 {strides = array<i32>} : memref<2x1xf32, #tpu.memory_space<vmem>>, vector<2x1xf32>,
    return
  }
}

</mosaic_0001>

<llo_original>
// kernel: tpu_custom_call.1
$region0: #{tpu_custom_call.1}
  #allocation0 [shape = 'u32[]', space=smem, size = 0x4, offset = 0x4, fixed_abs, tag = 'smem constant byte address 0x4 - core index']
  #allocation1 [shape = 'u32[144,128]{1,0:T(1,128)}', space=vmem, size = 0x12000, scoped, tag = 'internal scratch']
  #allocation2 [shape = 'f32[1]{0:T(128)S(6)}', space=smem, size = 0x200, scoped, tag = 'scoped memory for tpu_custom_call.1']
  %s0 = inlined_call_operand.vmem [shape: f32[2,16], index: 0, kind: input, shape index: {}]
  %s1 = inlined_call_operand.vmem [shape: f32[3,8,2], index: 1, kind: input, shape index: {}]
  %s2 = inlined_call_operand.vmem [shape: f32[8,1], index: 2, kind: input, shape index: {}]
  %s3 = inlined_call_operand.vmem [shape: f32[3,8,8], index: 3, kind: input, shape index: {}]
  %s4 = inlined_call_operand.vmem [shape: f32[8,1], index: 4, kind: input, shape index: {}]
  %s5 = inlined_call_operand.vmem [shape: f32[8,16], index: 5, kind: input, shape index: {}]
  %s6 = inlined_call_operand.vmem [shape: f32[2,8], index: 6, kind: input, shape index: {}]
  %s7 = inlined_call_operand.vmem [shape: f32[1,16], index: 7, kind: input, shape index: {}]
  %s8 = inlined_call_operand.vmem [shape: f32[1,16], index: 8, kind: input, shape index: {}]
  %s9 = inlined_call_operand.<no memory space> [shape: f32[1], index: 9, kind: input, shape index: {}]
  %s10 = inlined_call_operand.vmem [shape: f32[2,1], index: 10, kind: output, shape index: {}]
  %s11 = sld [smem:[#allocation0]]
  $region50: #{tpu_custom_call.1} parent=0
    _
  %s13 = ssub.s32 1, %s11
  %s14 = scalar_select 0, %s13, %s11
  %15 = sst [smem:[#allocation2]] %s9
  // Predicated region
  $region2: #{tpu_custom_call.1} parent=0 // pred_check
    _
  $region3: #{tpu_custom_call.1} parent=0 // pred_check_branch
    %17 = sbr.rel (0) target = $region5
  $region4: #{tpu_custom_call.1} parent=0 // pred_region
    _
  $region5: #{tpu_custom_call.1} parent=0 // pred_fallthru
    _
  // Predicated region
  $region6: #{tpu_custom_call.1} parent=0 // pred_check
    _
  $region7: #{tpu_custom_call.1} parent=0 // pred_check_branch
    %19 = sbr.rel (0) target = $region9
  $region8: #{tpu_custom_call.1} parent=0 // pred_region
    _
  $region9: #{tpu_custom_call.1} parent=0 // pred_fallthru
    _
  // Predicated region
  $region10: #{tpu_custom_call.1} parent=0 // pred_check
    _
  $region11: #{tpu_custom_call.1} parent=0 // pred_check_branch
    %21 = sbr.rel (0) target = $region13
  $region12: #{tpu_custom_call.1} parent=0 // pred_region
    _
  $region13: #{tpu_custom_call.1} parent=0 // pred_fallthru
    _
  // Predicated region
  $region14: #{tpu_custom_call.1} parent=0 // pred_check
    _
  $region15: #{tpu_custom_call.1} parent=0 // pred_check_branch
    %23 = sbr.rel (0) target = $region17
  $region16: #{tpu_custom_call.1} parent=0 // pred_region
    _
  $region17: #{tpu_custom_call.1} parent=0 // pred_fallthru
    _
  // Predicated region
  $region18: #{tpu_custom_call.1} parent=0 // pred_check
    _
  $region19: #{tpu_custom_call.1} parent=0 // pred_check_branch
    %25 = sbr.rel (0) target = $region21
  $region20: #{tpu_custom_call.1} parent=0 // pred_region
    _
  $region21: #{tpu_custom_call.1} parent=0 // pred_fallthru
    _
  // Predicated region
  $region22: #{tpu_custom_call.1} parent=0 // pred_check
    _
  $region23: #{tpu_custom_call.1} parent=0 // pred_check_branch
    %27 = sbr.rel (0) target = $region25
  $region24: #{tpu_custom_call.1} parent=0 // pred_region
    _
  $region25: #{tpu_custom_call.1} parent=0 // pred_fallthru
    _
  // Predicated region
  $region26: #{tpu_custom_call.1} parent=0 // pred_check
    _
  $region27: #{tpu_custom_call.1} parent=0 // pred_check_branch
    %29 = sbr.rel (0) target = $region29
  $region28: #{tpu_custom_call.1} parent=0 // pred_region
    _
  $region29: #{tpu_custom_call.1} parent=0 // pred_fallthru
    _
  // Predicated region
  $region30: #{tpu_custom_call.1} parent=0 // pred_check
    _
  $region31: #{tpu_custom_call.1} parent=0 // pred_check_branch
    %31 = sbr.rel (0) target = $region33
  $region32: #{tpu_custom_call.1} parent=0 // pred_region
    _
  $region33: #{tpu_custom_call.1} parent=0 // pred_fallthru
    _
  // Predicated region
  $region34: #{tpu_custom_call.1} parent=0 // pred_check
    _
  $region35: #{tpu_custom_call.1} parent=0 // pred_check_branch
    %33 = sbr.rel (0) target = $region37
  $region36: #{tpu_custom_call.1} parent=0 // pred_region
    _
  $region37: #{tpu_custom_call.1} parent=0 // pred_fallthru
    _
  // Predicated region
  $region38: #{tpu_custom_call.1} parent=0 // pred_check
    _
  $region39: #{tpu_custom_call.1} parent=0 // pred_check_branch
    %35 = sbr.rel (0) target = $region41
  $region40: #{tpu_custom_call.1} parent=0 // pred_region
    _
  $region41: #{tpu_custom_call.1} parent=0 // pred_fallthru
    _
  %v36 = vld [vmem:[%s7] sm:$0x1]
  %v37 = vld [vmem:[%s8] sm:$0x1]
  %v38 = vld [vmem:[%s0] sm:$0x3]
  %vm39 = vcmask 1047680
  %40 = vrot.lane.b32.xlu0 %v38, 16
  %v41 = vpop.permute.xlu0 %40
  %v42 = vsel %vm39, %v41, %v38
  %43 = vrot.lane.b32.xlu0 %v42, 16
  %v44 = vpop.permute.xlu0 %43
  %v45 = vsel %vm39, %v44, %v38
  %v47 = vlaneseq
  %v48 = vshrl.u32 %v47, 7
  %v49 = vsub.s32 0, %v48
  %v50 = vrot.slane %v36, %v49
  %51 = vrot.lane.b32.xlu0 %v50, 15
  %v52 = vpop.permute.xlu0 %51
  %v54 = vmul.f32 %v45, %v52
  %v56 = vlaneseq
  %v57 = vshrl.u32 %v56, 7
  %v58 = vsub.s32 0, %v57
  %v59 = vrot.slane %v37, %v58
  %60 = vrot.lane.b32.xlu0 %v59, 1
  %v61 = vpop.permute.xlu0 %60
  %v63 = vmul.f32 %v45, %v61
  %v64 = vld [vmem:[%s1] sm:$0xff]
  %s65 = scalar_lea.vmem %s1, 8
  %v66 = vld [vmem:[%s65] sm:$0xff]
  %vm67 = vcmask 15360
  %v69 = vsel %vm67, %v66, 0
  %vm71 = vcmask 1041408
  %v73 = vsel %vm71, %v38, 0
  %75 = vmatprep.subr.mxu0 0.0
  %76 = vmatpush1.msra.mxu0 0.0
  %77 = vmatprep.subr.mxu0 0.0
  %78 = vmatpush1.msra.mxu0 0.0
  %79 = vmatprep.subr.mxu0 0.0
  %80 = vmatpush1.msra.mxu0 0.0
  %81 = vmatprep.subr.mxu0 0.0
  %82 = vmatpush1.msra.mxu0 0.0
  %83 = vmatprep.subr.mxu0 0.0
  %84 = vmatpush1.msra.mxu0 0.0
  %85 = vmatprep.subr.mxu0 0.0
  %86 = vmatpush1.msra.mxu0 0.0
  %87 = vmatprep.subr.mxu0 0.0
  %88 = vmatpush1.msra.mxu0 0.0
  %89 = vmatprep.subr.mxu0 0.0
  %90 = vmatpush1.msra.mxu0 0.0
  %91 = vmatprep.subr.mxu0 0.0
  %92 = vmatpush1.msra.mxu0 0.0
  %93 = vmatprep.subr.mxu0 0.0
  %94 = vmatpush1.msra.mxu0 0.0
  %95 = vmatprep.subr.mxu0 0.0
  %96 = vmatpush1.msra.mxu0 0.0
  %97 = vmatprep.subr.mxu0 0.0
  %98 = vmatpush1.msra.mxu0 0.0
  %99 = vmatprep.subr.mxu0 0.0
  %100 = vmatpush1.msra.mxu0 0.0
  %101 = vmatprep.subr.mxu0 0.0
  %102 = vmatpush1.msra.mxu0 0.0
  %103 = vmatprep.subr.mxu0 0.0
  %104 = vmatpush1.msra.mxu0 0.0
  %105 = vmatprep.subr.mxu0 0.0
  %106 = vmatpush1.msra.mxu0 %v73
  %107 = vmatprep.subr.mxu0 0.0
  %108 = vmatpush2.msra.mxu0 0.0
  %109 = vmatprep.subr.mxu0 0.0
  %110 = vmatpush2.msra.mxu0 0.0
  %111 = vmatprep.subr.mxu0 0.0
  %112 = vmatpush2.msra.mxu0 0.0
  %113 = vmatprep.subr.mxu0 0.0
  %114 = vmatpush2.msra.mxu0 0.0
  %115 = vmatprep.subr.mxu0 0.0
  %116 = vmatpush2.msra.mxu0 0.0
  %117 = vmatprep.subr.mxu0 0.0
  %118 = vmatpush2.msra.mxu0 0.0
  %119 = vmatprep.subr.mxu0 0.0
  %120 = vmatpush2.msra.mxu0 0.0
  %121 = vmatprep.subr.mxu0 0.0
  %122 = vmatpush2.msra.mxu0 0.0
  %123 = vmatprep.subr.mxu0 0.0
  %124 = vmatpush2.msra.mxu0 0.0
  %125 = vmatprep.subr.mxu0 0.0
  %126 = vmatpush2.msra.mxu0 0.0
  %127 = vmatprep.subr.mxu0 0.0
  %128 = vmatpush2.msra.mxu0 0.0
  %129 = vmatprep.subr.mxu0 0.0
  %130 = vmatpush2.msra.mxu0 0.0
  %131 = vmatprep.subr.mxu0 0.0
  %132 = vmatpush2.msra.mxu0 0.0
  %133 = vmatprep.subr.mxu0 0.0
  %134 = vmatpush2.msra.mxu0 0.0
  %135 = vmatprep.subr.mxu0 0.0
  %136 = vmatpush2.msra.mxu0 0.0
  %137 = vmatprep.subr.mxu0 0.0
  %138 = vmatpush2.msra.mxu0 0.0
  %139 = vmatprep.mubr.f32.mxu0 0.0
  %140 = vmatmul.mubr.f32.gmra.mxu0 %v69
  %v141 = vpop.f32.mrf.mxu0
  %v142 = vadd.f32 0.0, %v141
  %v143 = vpop.f32.mrf.mxu0
  %144 = vdwg.mxu0
  %146 = vrot.lane.b32.xlu0 %v54, 113
  %v147 = vpop.permute.xlu0 %146
  %v149 = vsel %vm67, %v64, 0
  %v151 = vsel %vm71, %v147, 0
  %153 = vmatprep.subr.mxu0 0.0
  %154 = vmatpush1.msra.mxu0 0.0
  %155 = vmatprep.subr.mxu0 0.0
  %156 = vmatpush1.msra.mxu0 0.0
  %157 = vmatprep.subr.mxu0 0.0
  %158 = vmatpush1.msra.mxu0 0.0
  %159 = vmatprep.subr.mxu0 0.0
  %160 = vmatpush1.msra.mxu0 0.0
  %161 = vmatprep.subr.mxu0 0.0
  %162 = vmatpush1.msra.mxu0 0.0
  %163 = vmatprep.subr.mxu0 0.0
  %164 = vmatpush1.msra.mxu0 0.0
  %165 = vmatprep.subr.mxu0 0.0
  %166 = vmatpush1.msra.mxu0 0.0
  %167 = vmatprep.subr.mxu0 0.0
  %168 = vmatpush1.msra.mxu0 0.0
  %169 = vmatprep.subr.mxu0 0.0
  %170 = vmatpush1.msra.mxu0 0.0
  %171 = vmatprep.subr.mxu0 0.0
  %172 = vmatpush1.msra.mxu0 0.0
  %173 = vmatprep.subr.mxu0 0.0
  %174 = vmatpush1.msra.mxu0 0.0
  %175 = vmatprep.subr.mxu0 0.0
  %176 = vmatpush1.msra.mxu0 0.0
  %177 = vmatprep.subr.mxu0 0.0
  %178 = vmatpush1.msra.mxu0 0.0
  %179 = vmatprep.subr.mxu0 0.0
  %180 = vmatpush1.msra.mxu0 0.0
  %181 = vmatprep.subr.mxu0 0.0
  %182 = vmatpush1.msra.mxu0 0.0
  %183 = vmatprep.subr.mxu0 0.0
  %184 = vmatpush1.msra.mxu0 %v151
  %185 = vmatprep.subr.mxu0 0.0
  %186 = vmatpush2.msra.mxu0 0.0
  %187 = vmatprep.subr.mxu0 0.0
  %188 = vmatpush2.msra.mxu0 0.0
  %189 = vmatprep.subr.mxu0 0.0
  %190 = vmatpush2.msra.mxu0 0.0
  %191 = vmatprep.subr.mxu0 0.0
  %192 = vmatpush2.msra.mxu0 0.0
  %193 = vmatprep.subr.mxu0 0.0
  %194 = vmatpush2.msra.mxu0 0.0
  %195 = vmatprep.subr.mxu0 0.0
  %196 = vmatpush2.msra.mxu0 0.0
  %197 = vmatprep.subr.mxu0 0.0
  %198 = vmatpush2.msra.mxu0 0.0
  %199 = vmatprep.subr.mxu0 0.0
  %200 = vmatpush2.msra.mxu0 0.0
  %201 = vmatprep.subr.mxu0 0.0
  %202 = vmatpush2.msra.mxu0 0.0
  %203 = vmatprep.subr.mxu0 0.0
  %204 = vmatpush2.msra.mxu0 0.0
  %205 = vmatprep.subr.mxu0 0.0
  %206 = vmatpush2.msra.mxu0 0.0
  %207 = vmatprep.subr.mxu0 0.0
  %208 = vmatpush2.msra.mxu0 0.0
  %209 = vmatprep.subr.mxu0 0.0
  %210 = vmatpush2.msra.mxu0 0.0
  %211 = vmatprep.subr.mxu0 0.0
  %212 = vmatpush2.msra.mxu0 0.0
  %213 = vmatprep.subr.mxu0 0.0
  %214 = vmatpush2.msra.mxu0 0.0
  %215 = vmatprep.subr.mxu0 0.0
  %216 = vmatpush2.msra.mxu0 0.0
  %217 = vmatprep.mubr.f32.mxu0 0.0
  %218 = vmatmul.mubr.f32.gmra.mxu0 %v149
  %v219 = vpop.f32.mrf.mxu0
  %v220 = vadd.f32 %v142, %v219
  %v221 = vpop.f32.mrf.mxu0
  %222 = vdwg.mxu0
  %s223 = scalar_lea.vmem %s1, 16
  %v224 = vld [vmem:[%s223] sm:$0xff]
  %226 = vrot.lane.b32.xlu0 %v63, 127
  %v227 = vpop.permute.xlu0 %226
  %v229 = vsel %vm67, %v224, 0
  %v231 = vsel %vm71, %v227, 0
  %233 = vmatprep.subr.mxu0 0.0
  %234 = vmatpush1.msra.mxu0 0.0
  %235 = vmatprep.subr.mxu0 0.0
  %236 = vmatpush1.msra.mxu0 0.0
  %237 = vmatprep.subr.mxu0 0.0
  %238 = vmatpush1.msra.mxu0 0.0
  %239 = vmatprep.subr.mxu0 0.0
  %240 = vmatpush1.msra.mxu0 0.0
  %241 = vmatprep.subr.mxu0 0.0
  %242 = vmatpush1.msra.mxu0 0.0
  %243 = vmatprep.subr.mxu0 0.0
  %244 = vmatpush1.msra.mxu0 0.0
  %245 = vmatprep.subr.mxu0 0.0
  %246 = vmatpush1.msra.mxu0 0.0
  %247 = vmatprep.subr.mxu0 0.0
  %248 = vmatpush1.msra.mxu0 0.0
  %249 = vmatprep.subr.mxu0 0.0
  %250 = vmatpush1.msra.mxu0 0.0
  %251 = vmatprep.subr.mxu0 0.0
  %252 = vmatpush1.msra.mxu0 0.0
  %253 = vmatprep.subr.mxu0 0.0
  %254 = vmatpush1.msra.mxu0 0.0
  %255 = vmatprep.subr.mxu0 0.0
  %256 = vmatpush1.msra.mxu0 0.0
  %257 = vmatprep.subr.mxu0 0.0
  %258 = vmatpush1.msra.mxu0 0.0
  %259 = vmatprep.subr.mxu0 0.0
  %260 = vmatpush1.msra.mxu0 0.0
  %261 = vmatprep.subr.mxu0 0.0
  %262 = vmatpush1.msra.mxu0 0.0
  %263 = vmatprep.subr.mxu0 0.0
  %264 = vmatpush1.msra.mxu0 %v231
  %265 = vmatprep.subr.mxu0 0.0
  %266 = vmatpush2.msra.mxu0 0.0
  %267 = vmatprep.subr.mxu0 0.0
  %268 = vmatpush2.msra.mxu0 0.0
  %269 = vmatprep.subr.mxu0 0.0
  %270 = vmatpush2.msra.mxu0 0.0
  %271 = vmatprep.subr.mxu0 0.0
  %272 = vmatpush2.msra.mxu0 0.0
  %273 = vmatprep.subr.mxu0 0.0
  %274 = vmatpush2.msra.mxu0 0.0
  %275 = vmatprep.subr.mxu0 0.0
  %276 = vmatpush2.msra.mxu0 0.0
  %277 = vmatprep.subr.mxu0 0.0
  %278 = vmatpush2.msra.mxu0 0.0
  %279 = vmatprep.subr.mxu0 0.0
  %280 = vmatpush2.msra.mxu0 0.0
  %281 = vmatprep.subr.mxu0 0.0
  %282 = vmatpush2.msra.mxu0 0.0
  %283 = vmatprep.subr.mxu0 0.0
  %284 = vmatpush2.msra.mxu0 0.0
  %285 = vmatprep.subr.mxu0 0.0
  %286 = vmatpush2.msra.mxu0 0.0
  %287 = vmatprep.subr.mxu0 0.0
  %288 = vmatpush2.msra.mxu0 0.0
  %289 = vmatprep.subr.mxu0 0.0
  %290 = vmatpush2.msra.mxu0 0.0
  %291 = vmatprep.subr.mxu0 0.0
  %292 = vmatpush2.msra.mxu0 0.0
  %293 = vmatprep.subr.mxu0 0.0
  %294 = vmatpush2.msra.mxu0 0.0
  %295 = vmatprep.subr.mxu0 0.0
  %296 = vmatpush2.msra.mxu0 0.0
  %297 = vmatprep.mubr.f32.mxu0 0.0
  %298 = vmatmul.mubr.f32.gmra.mxu0 %v229
  %v299 = vpop.f32.mrf.mxu0
  %v300 = vadd.f32 0.0, %v299
  %v301 = vpop.f32.mrf.mxu0
  %302 = vdwg.mxu0
  %v303 = vadd.f32 %v220, %v300
  %v304 = vld [vmem:[%s2] sm:$0xff]
  %306 = vset.pattern.permute.xlu0 0
  %307 = vperm.xlu0 %306, %v304
  %v308 = vpop.permute.xlu0 %307
  %v310 = vadd.f32 %v303, %v308
  %v311 = vmax.f32 %v310, 0.0
  %312 = vrot.lane.b32.xlu0 %v311, 16
  %v313 = vpop.permute.xlu0 %312
  %v314 = vsel %vm39, %v313, %v311
  %315 = vrot.lane.b32.xlu0 %v314, 16
  %v316 = vpop.permute.xlu0 %315
  %v317 = vsel %vm39, %v316, %v311
  %v318 = vmul.f32 %v317, %v52
  %v319 = vmul.f32 %v317, %v61
  %v320 = vld [vmem:[%s3] sm:$0xff]
  %s321 = scalar_lea.vmem %s3, 8
  %v322 = vld [vmem:[%s321] sm:$0xff]
  %vm323 = vcmask 64512
  %v325 = vsel %vm323, %v322, 0
  %327 = vmatprep.subr.mxu0 0.0
  %328 = vmatpush1.msra.mxu0 0.0
  %329 = vmatprep.subr.mxu0 0.0
  %330 = vmatpush1.msra.mxu0 0.0
  %331 = vmatprep.subr.mxu0 0.0
  %332 = vmatpush1.msra.mxu0 0.0
  %333 = vmatprep.subr.mxu0 0.0
  %334 = vmatpush1.msra.mxu0 0.0
  %335 = vmatprep.subr.mxu0 0.0
  %336 = vmatpush1.msra.mxu0 0.0
  %337 = vmatprep.subr.mxu0 0.0
  %338 = vmatpush1.msra.mxu0 0.0
  %339 = vmatprep.subr.mxu0 0.0
  %340 = vmatpush1.msra.mxu0 0.0
  %341 = vmatprep.subr.mxu0 0.0
  %342 = vmatpush1.msra.mxu0 0.0
  %343 = vmatprep.subr.mxu0 0.0
  %344 = vmatpush1.msra.mxu0 0.0
  %345 = vmatprep.subr.mxu0 0.0
  %346 = vmatpush1.msra.mxu0 0.0
  %347 = vmatprep.subr.mxu0 0.0
  %348 = vmatpush1.msra.mxu0 0.0
  %349 = vmatprep.subr.mxu0 0.0
  %350 = vmatpush1.msra.mxu0 0.0
  %351 = vmatprep.subr.mxu0 0.0
  %352 = vmatpush1.msra.mxu0 0.0
  %353 = vmatprep.subr.mxu0 0.0
  %354 = vmatpush1.msra.mxu0 0.0
  %355 = vmatprep.subr.mxu0 0.0
  %356 = vmatpush1.msra.mxu0 0.0
  %357 = vmatprep.subr.mxu0 0.0
  %358 = vmatpush1.msra.mxu0 %v311
  %359 = vmatprep.subr.mxu0 0.0
  %360 = vmatpush2.msra.mxu0 0.0
  %361 = vmatprep.subr.mxu0 0.0
  %362 = vmatpush2.msra.mxu0 0.0
  %363 = vmatprep.subr.mxu0 0.0
  %364 = vmatpush2.msra.mxu0 0.0
  %365 = vmatprep.subr.mxu0 0.0
  %366 = vmatpush2.msra.mxu0 0.0
  %367 = vmatprep.subr.mxu0 0.0
  %368 = vmatpush2.msra.mxu0 0.0
  %369 = vmatprep.subr.mxu0 0.0
  %370 = vmatpush2.msra.mxu0 0.0
  %371 = vmatprep.subr.mxu0 0.0
  %372 = vmatpush2.msra.mxu0 0.0
  %373 = vmatprep.subr.mxu0 0.0
  %374 = vmatpush2.msra.mxu0 0.0
  %375 = vmatprep.subr.mxu0 0.0
  %376 = vmatpush2.msra.mxu0 0.0
  %377 = vmatprep.subr.mxu0 0.0
  %378 = vmatpush2.msra.mxu0 0.0
  %379 = vmatprep.subr.mxu0 0.0
  %380 = vmatpush2.msra.mxu0 0.0
  %381 = vmatprep.subr.mxu0 0.0
  %382 = vmatpush2.msra.mxu0 0.0
  %383 = vmatprep.subr.mxu0 0.0
  %384 = vmatpush2.msra.mxu0 0.0
  %385 = vmatprep.subr.mxu0 0.0
  %386 = vmatpush2.msra.mxu0 0.0
  %387 = vmatprep.subr.mxu0 0.0
  %388 = vmatpush2.msra.mxu0 0.0
  %389 = vmatprep.subr.mxu0 0.0
  %390 = vmatpush2.msra.mxu0 0.0
  %391 = vmatprep.mubr.f32.mxu0 0.0
  %392 = vmatmul.mubr.f32.gmra.mxu0 %v325
  %v393 = vpop.f32.mrf.mxu0
  %v394 = vadd.f32 0.0, %v393
  %v395 = vpop.f32.mrf.mxu0
  %396 = vdwg.mxu0
  %398 = vrot.lane.b32.xlu0 %v318, 113
  %v399 = vpop.permute.xlu0 %398
  %v402 = vsel %vm323, %v320, 0
  %404 = vmatprep.subr.mxu0 0.0
  %405 = vmatpush1.msra.mxu0 0.0
  %406 = vmatprep.subr.mxu0 0.0
  %407 = vmatpush1.msra.mxu0 0.0
  %408 = vmatprep.subr.mxu0 0.0
  %409 = vmatpush1.msra.mxu0 0.0
  %410 = vmatprep.subr.mxu0 0.0
  %411 = vmatpush1.msra.mxu0 0.0
  %412 = vmatprep.subr.mxu0 0.0
  %413 = vmatpush1.msra.mxu0 0.0
  %414 = vmatprep.subr.mxu0 0.0
  %415 = vmatpush1.msra.mxu0 0.0
  %416 = vmatprep.subr.mxu0 0.0
  %417 = vmatpush1.msra.mxu0 0.0
  %418 = vmatprep.subr.mxu0 0.0
  %419 = vmatpush1.msra.mxu0 0.0
  %420 = vmatprep.subr.mxu0 0.0
  %421 = vmatpush1.msra.mxu0 0.0
  %422 = vmatprep.subr.mxu0 0.0
  %423 = vmatpush1.msra.mxu0 0.0
  %424 = vmatprep.subr.mxu0 0.0
  %425 = vmatpush1.msra.mxu0 0.0
  %426 = vmatprep.subr.mxu0 0.0
  %427 = vmatpush1.msra.mxu0 0.0
  %428 = vmatprep.subr.mxu0 0.0
  %429 = vmatpush1.msra.mxu0 0.0
  %430 = vmatprep.subr.mxu0 0.0
  %431 = vmatpush1.msra.mxu0 0.0
  %432 = vmatprep.subr.mxu0 0.0
  %433 = vmatpush1.msra.mxu0 0.0
  %434 = vmatprep.subr.mxu0 0.0
  %435 = vmatpush1.msra.mxu0 %v399
  %436 = vmatprep.subr.mxu0 0.0
  %437 = vmatpush2.msra.mxu0 0.0
  %438 = vmatprep.subr.mxu0 0.0
  %439 = vmatpush2.msra.mxu0 0.0
  %440 = vmatprep.subr.mxu0 0.0
  %441 = vmatpush2.msra.mxu0 0.0
  %442 = vmatprep.subr.mxu0 0.0
  %443 = vmatpush2.msra.mxu0 0.0
  %444 = vmatprep.subr.mxu0 0.0
  %445 = vmatpush2.msra.mxu0 0.0
  %446 = vmatprep.subr.mxu0 0.0
  %447 = vmatpush2.msra.mxu0 0.0
  %448 = vmatprep.subr.mxu0 0.0
  %449 = vmatpush2.msra.mxu0 0.0
  %450 = vmatprep.subr.mxu0 0.0
  %451 = vmatpush2.msra.mxu0 0.0
  %452 = vmatprep.subr.mxu0 0.0
  %453 = vmatpush2.msra.mxu0 0.0
  %454 = vmatprep.subr.mxu0 0.0
  %455 = vmatpush2.msra.mxu0 0.0
  %456 = vmatprep.subr.mxu0 0.0
  %457 = vmatpush2.msra.mxu0 0.0
  %458 = vmatprep.subr.mxu0 0.0
  %459 = vmatpush2.msra.mxu0 0.0
  %460 = vmatprep.subr.mxu0 0.0
  %461 = vmatpush2.msra.mxu0 0.0
  %462 = vmatprep.subr.mxu0 0.0
  %463 = vmatpush2.msra.mxu0 0.0
  %464 = vmatprep.subr.mxu0 0.0
  %465 = vmatpush2.msra.mxu0 0.0
  %466 = vmatprep.subr.mxu0 0.0
  %467 = vmatpush2.msra.mxu0 0.0
  %468 = vmatprep.mubr.f32.mxu0 0.0
  %469 = vmatmul.mubr.f32.gmra.mxu0 %v402
  %v470 = vpop.f32.mrf.mxu0
  %v471 = vadd.f32 %v394, %v470
  %v472 = vpop.f32.mrf.mxu0
  %473 = vdwg.mxu0
  %s474 = scalar_lea.vmem %s3, 16
  %v475 = vld [vmem:[%s474] sm:$0xff]
  %477 = vrot.lane.b32.xlu0 %v319, 127
  %v478 = vpop.permute.xlu0 %477
  %v481 = vsel %vm323, %v475, 0
  %483 = vmatprep.subr.mxu0 0.0
  %484 = vmatpush1.msra.mxu0 0.0
  %485 = vmatprep.subr.mxu0 0.0
  %486 = vmatpush1.msra.mxu0 0.0
  %487 = vmatprep.subr.mxu0 0.0
  %488 = vmatpush1.msra.mxu0 0.0
  %489 = vmatprep.subr.mxu0 0.0
  %490 = vmatpush1.msra.mxu0 0.0
  %491 = vmatprep.subr.mxu0 0.0
  %492 = vmatpush1.msra.mxu0 0.0
  %493 = vmatprep.subr.mxu0 0.0
  %494 = vmatpush1.msra.mxu0 0.0
  %495 = vmatprep.subr.mxu0 0.0
  %496 = vmatpush1.msra.mxu0 0.0
  %497 = vmatprep.subr.mxu0 0.0
  %498 = vmatpush1.msra.mxu0 0.0
  %499 = vmatprep.subr.mxu0 0.0
  %500 = vmatpush1.msra.mxu0 0.0
  %501 = vmatprep.subr.mxu0 0.0
  %502 = vmatpush1.msra.mxu0 0.0
  %503 = vmatprep.subr.mxu0 0.0
  %504 = vmatpush1.msra.mxu0 0.0
  %505 = vmatprep.subr.mxu0 0.0
  %506 = vmatpush1.msra.mxu0 0.0
  %507 = vmatprep.subr.mxu0 0.0
  %508 = vmatpush1.msra.mxu0 0.0
  %509 = vmatprep.subr.mxu0 0.0
  %510 = vmatpush1.msra.mxu0 0.0
  %511 = vmatprep.subr.mxu0 0.0
  %512 = vmatpush1.msra.mxu0 0.0
  %513 = vmatprep.subr.mxu0 0.0
  %514 = vmatpush1.msra.mxu0 %v478
  %515 = vmatprep.subr.mxu0 0.0
  %516 = vmatpush2.msra.mxu0 0.0
  %517 = vmatprep.subr.mxu0 0.0
  %518 = vmatpush2.msra.mxu0 0.0
  %519 = vmatprep.subr.mxu0 0.0
  %520 = vmatpush2.msra.mxu0 0.0
  %521 = vmatprep.subr.mxu0 0.0
  %522 = vmatpush2.msra.mxu0 0.0
  %523 = vmatprep.subr.mxu0 0.0
  %524 = vmatpush2.msra.mxu0 0.0
  %525 = vmatprep.subr.mxu0 0.0
  %526 = vmatpush2.msra.mxu0 0.0
  %527 = vmatprep.subr.mxu0 0.0
  %528 = vmatpush2.msra.mxu0 0.0
  %529 = vmatprep.subr.mxu0 0.0
  %530 = vmatpush2.msra.mxu0 0.0
  %531 = vmatprep.subr.mxu0 0.0
  %532 = vmatpush2.msra.mxu0 0.0
  %533 = vmatprep.subr.mxu0 0.0
  %534 = vmatpush2.msra.mxu0 0.0
  %535 = vmatprep.subr.mxu0 0.0
  %536 = vmatpush2.msra.mxu0 0.0
  %537 = vmatprep.subr.mxu0 0.0
  %538 = vmatpush2.msra.mxu0 0.0
  %539 = vmatprep.subr.mxu0 0.0
  %540 = vmatpush2.msra.mxu0 0.0
  %541 = vmatprep.subr.mxu0 0.0
  %542 = vmatpush2.msra.mxu0 0.0
  %543 = vmatprep.subr.mxu0 0.0
  %544 = vmatpush2.msra.mxu0 0.0
  %545 = vmatprep.subr.mxu0 0.0
  %546 = vmatpush2.msra.mxu0 0.0
  %547 = vmatprep.mubr.f32.mxu0 0.0
  %548 = vmatmul.mubr.f32.gmra.mxu0 %v481
  %v549 = vpop.f32.mrf.mxu0
  %v550 = vadd.f32 0.0, %v549
  %v551 = vpop.f32.mrf.mxu0
  %552 = vdwg.mxu0
  %v553 = vadd.f32 %v471, %v550
  %v554 = vld [vmem:[%s4] sm:$0xff]
  %556 = vset.pattern.permute.xlu0 0
  %557 = vperm.xlu0 %556, %v554
  %v558 = vpop.permute.xlu0 %557
  %v560 = vadd.f32 %v553, %v558
  %v561 = vmax.f32 %v560, 0.0
  %v562 = vld [vmem:[%s5] sm:$0xff]
  %v563 = vmul.f32 %v561, %v562
  %v564 = vld [vmem:[%s6] sm:$0x3]
  %v566 = vsel %vm323, %v564, 0
  %568 = vmatprep.subr.mxu0 0.0
  %569 = vmatpush1.msra.mxu0 0.0
  %570 = vmatprep.subr.mxu0 0.0
  %571 = vmatpush1.msra.mxu0 0.0
  %572 = vmatprep.subr.mxu0 0.0
  %573 = vmatpush1.msra.mxu0 0.0
  %574 = vmatprep.subr.mxu0 0.0
  %575 = vmatpush1.msra.mxu0 0.0
  %576 = vmatprep.subr.mxu0 0.0
  %577 = vmatpush1.msra.mxu0 0.0
  %578 = vmatprep.subr.mxu0 0.0
  %579 = vmatpush1.msra.mxu0 0.0
  %580 = vmatprep.subr.mxu0 0.0
  %581 = vmatpush1.msra.mxu0 0.0
  %582 = vmatprep.subr.mxu0 0.0
  %583 = vmatpush1.msra.mxu0 0.0
  %584 = vmatprep.subr.mxu0 0.0
  %585 = vmatpush1.msra.mxu0 0.0
  %586 = vmatprep.subr.mxu0 0.0
  %587 = vmatpush1.msra.mxu0 0.0
  %588 = vmatprep.subr.mxu0 0.0
  %589 = vmatpush1.msra.mxu0 0.0
  %590 = vmatprep.subr.mxu0 0.0
  %591 = vmatpush1.msra.mxu0 0.0
  %592 = vmatprep.subr.mxu0 0.0
  %593 = vmatpush1.msra.mxu0 0.0
  %594 = vmatprep.subr.mxu0 0.0
  %595 = vmatpush1.msra.mxu0 0.0
  %596 = vmatprep.subr.mxu0 0.0
  %597 = vmatpush1.msra.mxu0 0.0
  %598 = vmatprep.subr.mxu0 0.0
  %599 = vmatpush1.msra.mxu0 %v563
  %600 = vmatprep.subr.mxu0 0.0
  %601 = vmatpush2.msra.mxu0 0.0
  %602 = vmatprep.subr.mxu0 0.0
  %603 = vmatpush2.msra.mxu0 0.0
  %604 = vmatprep.subr.mxu0 0.0
  %605 = vmatpush2.msra.mxu0 0.0
  %606 = vmatprep.subr.mxu0 0.0
  %607 = vmatpush2.msra.mxu0 0.0
  %608 = vmatprep.subr.mxu0 0.0
  %609 = vmatpush2.msra.mxu0 0.0
  %610 = vmatprep.subr.mxu0 0.0
  %611 = vmatpush2.msra.mxu0 0.0
  %612 = vmatprep.subr.mxu0 0.0
  %613 = vmatpush2.msra.mxu0 0.0
  %614 = vmatprep.subr.mxu0 0.0
  %615 = vmatpush2.msra.mxu0 0.0
  %616 = vmatprep.subr.mxu0 0.0
  %617 = vmatpush2.msra.mxu0 0.0
  %618 = vmatprep.subr.mxu0 0.0
  %619 = vmatpush2.msra.mxu0 0.0
  %620 = vmatprep.subr.mxu0 0.0
  %621 = vmatpush2.msra.mxu0 0.0
  %622 = vmatprep.subr.mxu0 0.0
  %623 = vmatpush2.msra.mxu0 0.0
  %624 = vmatprep.subr.mxu0 0.0
  %625 = vmatpush2.msra.mxu0 0.0
  %626 = vmatprep.subr.mxu0 0.0
  %627 = vmatpush2.msra.mxu0 0.0
  %628 = vmatprep.subr.mxu0 0.0
  %629 = vmatpush2.msra.mxu0 0.0
  %630 = vmatprep.subr.mxu0 0.0
  %631 = vmatpush2.msra.mxu0 0.0
  %632 = vmatprep.mubr.f32.mxu0 0.0
  %633 = vmatmul.mubr.f32.gmra.mxu0 %v566
  %v634 = vpop.f32.mrf.mxu0
  %v635 = vadd.f32 0.0, %v634
  %v636 = vpop.f32.mrf.mxu0
  %637 = vdwg.mxu0
  %vm638 = vcmask 123904
  %v639 = vsel %vm638, %v635, 0.0
  %640 = vadd.xlane.f32.xlu0 %v639
  %v641 = vpop.xlane.xlu0 %640
  %s642 = sld [smem:[#allocation2]]
  %v643 = vstv %s642
  %v644 = vadd.f32 %v641, %v643
  %vm645 = vcmask 1024
  %646 = vst.msk [vmem:[%s10] sm:$0x3] %vm645, %v644
  // Predicated region
  $region42: #{tpu_custom_call.1} parent=0 // pred_check
    _
  $region43: #{tpu_custom_call.1} parent=0 // pred_check_branch
    %648 = sbr.rel (0) target = $region45
  $region44: #{tpu_custom_call.1} parent=0 // pred_region
    _
  $region45: #{tpu_custom_call.1} parent=0 // pred_fallthru
    _
  // Predicated region
  $region46: #{tpu_custom_call.1} parent=0 // pred_check
    _
  $region47: #{tpu_custom_call.1} parent=0 // pred_check_branch
    %650 = sbr.rel (0) target = $region49
  $region48: #{tpu_custom_call.1} parent=0 // pred_region
    _
  $region49: #{tpu_custom_call.1} parent=0 // pred_fallthru
    _

</llo_original>
